<compile_context>
chip_gen: v7x
topology: tpu7x:2x2x1
jax: 0.10.0
libtpu: 0.0.40
codegen_flags: <defaults>
</compile_context>

<pallas_src>
import jax
import jax.numpy as jnp
from jax.experimental import pallas as pl
from jax.experimental.pallas import tpu as pltpu

MANTISSA_BITS = 10
if MANTISSA_BITS <= 3:
    _L_M = MANTISSA_BITS
elif MANTISSA_BITS == 4:
    _L_M = 3
else:
    _L_M = 4
_OFFSET = 2.0 ** (-_L_M)
_QLEVEL = float(2 ** MANTISSA_BITS)
_INV_QLEVEL = 1.0 / _QLEVEL


def _ceil_to(n, m):
    return ((n + m - 1) // m) * m


def _split_bf16(v):
    """Exact bf16 hi/lo split of an f32 array with <= ~15 significant bits."""
    hi = v.astype(jnp.bfloat16)
    lo = (v - hi.astype(jnp.float32)).astype(jnp.bfloat16)
    return hi, lo


def _lmul_side_factors(v, offset):
    """l-mul factors for one operand side.

    Returns (a_hi, a_lo, p) with
      a = (round_q(mant(v)) + offset) * 2^exp(v)   (exact bf16 hi/lo pair)
      p = 2^exp(v)                                  (exact bf16, power of two)
    both zero-masked where v == 0.
    """
    v = v.astype(jnp.float32)
    z = v == 0.0
    m, e = jnp.frexp(v)
    mq = jnp.round(jnp.where(z, 0.0, m) * _QLEVEL) * _INV_QLEVEL   # <=10-bit mantissa
    e = jnp.where(z, 0, e)
    p = jnp.ldexp(jnp.ones_like(v), e)                             # 2^e, exact
    a = jnp.where(z, 0.0, (mq + offset) * p)                       # <=11 sig bits * 2^e
    pe = jnp.where(z, 0.0, p).astype(jnp.bfloat16)                 # exact in bf16
    a_hi, a_lo = _split_bf16(a)
    return a_hi, a_lo, pe


def lmul_linear_kernel(axh_ref, axl_ref, ex_ref, ew_ref, awh_ref, awl_ref,
                       b_ref, o_ref):
    k = pl.program_id(2)

    # Output tile is resident across the k (reduction) axis: init with bias once,
    # then accumulate the four exact single-pass bf16 MXU matmuls directly into it.
    @pl.when(k == 0)
    def _():
        o_ref[...] = jnp.zeros_like(o_ref) + b_ref[...]   # (1, tn) bias broadcasts

    ex = ex_ref[...]   # 2^xe   (bf16, exact)
    ew = ew_ref[...]   # 2^we   (bf16, exact)
    o_ref[...] += (
        jnp.dot(axh_ref[...], ew, preferred_element_type=jnp.float32)
        + jnp.dot(axl_ref[...], ew, preferred_element_type=jnp.float32)
        + jnp.dot(ex, awh_ref[...], preferred_element_type=jnp.float32)
        + jnp.dot(ex, awl_ref[...], preferred_element_type=jnp.float32)
    )


def lmul_linear(x, weight, bias=None, *, tb=256, tn=512, tk=512):
    """x: (B, IN), weight: (OUT, IN), bias: (OUT,) -> (B, OUT) float32."""
    x = x.astype(jnp.float32)
    weight = weight.astype(jnp.float32)
    B, IN = x.shape
    OUT, IN2 = weight.shape
    assert IN == IN2

    # ---- x-side factors: computed ONCE in the wrapper (not per grid point) ----
    axh, axl, ex = _lmul_side_factors(x, _OFFSET)                 # (B, IN) bf16

    # ---- weight-side factors: computed ONCE, lane-major (IN, OUT), bf16 -------
    awh, awl, ew = _lmul_side_factors(weight.T, 0.0)              # (IN, OUT) bf16

    if bias is None:
        bias = jnp.zeros((OUT,), jnp.float32)
    bias2d = bias.astype(jnp.float32).reshape(1, OUT)

    # ---- lane-dense tiling: 128-multiples on lane dims, 16-multiples on B -----
    tb = min(tb, _ceil_to(B, 16))
    tn = min(tn, _ceil_to(OUT, 128))
    tk = min(tk, _ceil_to(IN, 128))
    Bp, OUTp, INp = _ceil_to(B, tb), _ceil_to(OUT, tn), _ceil_to(IN, tk)

    # v7x megacore: make sure the two TensorCores each get at least one parallel tile.
    if Bp == tb and OUTp == tn and tn % 256 == 0:
        tn //= 2

    # zero padding is lmul-neutral (zero-masked factors contribute nothing)
    def pad_a(a, r, c):
        return jnp.pad(a, ((0, r - a.shape[0]), (0, c - a.shape[1])))

    axh, axl, ex = (pad_a(a, Bp, INp) for a in (axh, axl, ex))
    ew, awh, awl = (pad_a(a, INp, OUTp) for a in (ew, awh, awl))
    bp = pad_a(bias2d, 1, OUTp)

    grid = (Bp // tb, OUTp // tn, INp // tk)
    out = pl.pallas_call(
        lmul_linear_kernel,
        out_shape=jax.ShapeDtypeStruct((Bp, OUTp), jnp.float32),
        grid_spec=pltpu.PrefetchScalarGridSpec(
            num_scalar_prefetch=0,
            grid=grid,
            in_specs=[
                pl.BlockSpec((tb, tk), lambda i, j, k: (i, k)),   # ax_hi
                pl.BlockSpec((tb, tk), lambda i, j, k: (i, k)),   # ax_lo
                pl.BlockSpec((tb, tk), lambda i, j, k: (i, k)),   # 2^xe
                pl.BlockSpec((tk, tn), lambda i, j, k: (k, j)),   # 2^we
                pl.BlockSpec((tk, tn), lambda i, j, k: (k, j)),   # aw_hi
                pl.BlockSpec((tk, tn), lambda i, j, k: (k, j)),   # aw_lo
                pl.BlockSpec((1, tn), lambda i, j, k: (0, j)),    # bias
            ],
            out_specs=pl.BlockSpec((tb, tn), lambda i, j, k: (i, j)),
        ),
        compiler_params=pltpu.CompilerParams(
            dimension_semantics=("parallel", "parallel", "arbitrary")),
    )(axh, axl, ex, ew, awh, awl, bp)
    return out[:B, :OUT]


# ---- pure-JAX reference (mirrors the PyTorch lmul_approximation) ------------
def _lmul_ref(x, y):
    xz = x == 0.0
    yz = y == 0.0
    xm, xe = jnp.frexp(x)
    ym, ye = jnp.frexp(y)
    xm = jnp.where(xz, 0.0, xm)
    xe = jnp.where(xz, 0, xe)
    ym = jnp.where(yz, 0.0, ym)
    ye = jnp.where(yz, 0, ye)
    xmq = jnp.round(xm * _QLEVEL) / _QLEVEL
    ymq = jnp.round(ym * _QLEVEL) / _QLEVEL
    res = jnp.ldexp(xmq + ymq + _OFFSET, xe + ye)
    return jnp.where(xz | yz, 0.0, res)


def _lmul_linear_ref(x, weight, bias):
    wt = weight.T                                   # (IN, OUT)
    prod = _lmul_ref(x[:, :, None], wt[None, :, :])
    return jnp.sum(prod, axis=1) + bias[None, :]


if __name__ == "__main__":
    key = jax.random.PRNGKey(0)

    # ---- test 1: small shapes, single-tile path ------------------------------
    B, IN, OUT = 16, 32, 16
    kx, kw, kb = jax.random.split(key, 3)
    bound = 1.0 / (IN ** 0.5)
    weight = jax.random.uniform(kw, (OUT, IN), jnp.float32, -bound, bound)
    bias = jax.random.uniform(kb, (OUT,), jnp.float32, -bound, bound)
    x = jax.random.normal(kx, (B, IN), jnp.float32)

    out = lmul_linear(x, weight, bias)
    out = jax.block_until_ready(out)
    ref = _lmul_linear_ref(x, weight, bias)
    assert out.shape == (B, OUT)
    assert jnp.allclose(out, ref, rtol=1e-5, atol=1e-4), (
        f"test1 max abs err {jnp.max(jnp.abs(out - ref))}")

    # ---- test 2: exercises multi-tile grid, K-reduction accumulator, padding --
    B2, IN2, OUT2 = 20, 200, 130
    k2 = jax.random.split(key, 6)
    bound2 = 1.0 / (IN2 ** 0.5)
    weight2 = jax.random.uniform(k2[3], (OUT2, IN2), jnp.float32, -bound2, bound2)
    bias2 = jax.random.uniform(k2[4], (OUT2,), jnp.float32, -bound2, bound2)
    x2 = jax.random.normal(k2[5], (B2, IN2), jnp.float32)

    out2 = lmul_linear(x2, weight2, bias2, tb=16, tn=128, tk=128)
    out2 = jax.block_until_ready(out2)
    ref2 = _lmul_linear_ref(x2, weight2, bias2)
    assert out2.shape == (B2, OUT2)
    assert jnp.allclose(out2, ref2, rtol=1e-5, atol=1e-4), (
        f"test2 max abs err {jnp.max(jnp.abs(out2 - ref2))}")

    print("KERNEL_OK")
</pallas_src>

<mosaic_0001>
module attributes {stable_mosaic.version = 11 : i64} {
  func.func @lmul_linear_kernel(%arg0: i32, %arg1: i32, %arg2: i32, %arg3: memref<16x128xbf16, #tpu.memory_space<vmem>>, %arg4: memref<16x128xbf16, #tpu.memory_space<vmem>>, %arg5: memref<16x128xbf16, #tpu.memory_space<vmem>>, %arg6: memref<128x128xbf16, #tpu.memory_space<vmem>>, %arg7: memref<128x128xbf16, #tpu.memory_space<vmem>>, %arg8: memref<128x128xbf16, #tpu.memory_space<vmem>>, %arg9: memref<1x128xf32, #tpu.memory_space<vmem>>, %arg10: memref<16x128xf32, #tpu.memory_space<vmem>>) attributes {dimension_semantics = [#tpu.dimension_semantics<parallel>, #tpu.dimension_semantics<parallel>, #tpu.dimension_semantics<arbitrary>], iteration_bounds = array<i64: 1, 1, 1>, scalar_prefetch = 0 : i64, scratch_operands = 0 : i64, tpu.core_type = #tpu.core_type<tc>, window_params = [{transform_indices = @transform_0, window_bounds = array<i64: 16, 128>}, {transform_indices = @transform_1, window_bounds = array<i64: 16, 128>}, {transform_indices = @transform_2, window_bounds = array<i64: 16, 128>}, {transform_indices = @transform_3, window_bounds = array<i64: 128, 128>}, {transform_indices = @transform_4, window_bounds = array<i64: 128, 128>}, {transform_indices = @transform_5, window_bounds = array<i64: 128, 128>}, {transform_indices = @transform_6, window_bounds = array<i64: 1, 128>}, {transform_indices = @transform_7, window_bounds = array<i64: 16, 128>}]} {
    %c0_i32 = arith.constant 0 : i32
    %0 = arith.cmpi eq, %arg2, %c0_i32 : i32
    %1 = arith.extui %0 : i1 to i32
    %c0_i32_0 = arith.constant 0 : i32
    %2 = arith.cmpi ne, %1, %c0_i32_0 : i32
    scf.if %2 {
      %cst_19 = arith.constant 0.000000e+00 : f32
      %19 = vector.broadcast %cst_19 : f32 to vector<16x128xf32>
      %c0_20 = arith.constant 0 : index
      %c0_21 = arith.constant 0 : index
      %20 = vector.load %arg9[%c0_20, %c0_21] : memref<1x128xf32, #tpu.memory_space<vmem>>, vector<1x128xf32>
      %21 = vector.broadcast %20 : vector<1x128xf32> to vector<16x128xf32>
      %22 = arith.addf %19, %21 : vector<16x128xf32>
      %c0_22 = arith.constant 0 : index
      %c0_23 = arith.constant 0 : index
      %23 = vector.load %arg10[%c0_22, %c0_23] : memref<16x128xf32, #tpu.memory_space<vmem>>, vector<16x128xf32>
      tpu.vector_store %arg10[%c0_22, %c0_23], %22 {strides = array<i32>} : memref<16x128xf32, #tpu.memory_space<vmem>>, vector<16x128xf32>,
    } else {
    }
    %c0 = arith.constant 0 : index
    %c0_1 = arith.constant 0 : index
    %3 = vector.load %arg5[%c0, %c0_1] : memref<16x128xbf16, #tpu.memory_space<vmem>>, vector<16x128xbf16>
    %c0_2 = arith.constant 0 : index
    %c0_3 = arith.constant 0 : index
    %4 = vector.load %arg6[%c0_2, %c0_3] : memref<128x128xbf16, #tpu.memory_space<vmem>>, vector<128x128xbf16>
    %c0_4 = arith.constant 0 : index
    %c0_5 = arith.constant 0 : index
    %5 = vector.load %arg10[%c0_4, %c0_5] : memref<16x128xf32, #tpu.memory_space<vmem>>, vector<16x128xf32>
    %c0_6 = arith.constant 0 : index
    %c0_7 = arith.constant 0 : index
    %6 = vector.load %arg3[%c0_6, %c0_7] : memref<16x128xbf16, #tpu.memory_space<vmem>>, vector<16x128xbf16>
    %cst = arith.constant dense<0.000000e+00> : vector<16x128xf32>
    %7 = tpu.matmul %6, %4, %cst {dimension_numbers = #tpu.dot_dimension_numbers<[1], [0], [0], [1], [0, 0, 1, 1], [], []>} : vector<16x128xbf16>, vector<128x128xbf16>, vector<16x128xf32> -> vector<16x128xf32>
    %c0_8 = arith.constant 0 : index
    %c0_9 = arith.constant 0 : index
    %8 = vector.load %arg4[%c0_8, %c0_9] : memref<16x128xbf16, #tpu.memory_space<vmem>>, vector<16x128xbf16>
    %cst_10 = arith.constant dense<0.000000e+00> : vector<16x128xf32>
    %9 = tpu.matmul %8, %4, %cst_10 {dimension_numbers = #tpu.dot_dimension_numbers<[1], [0], [0], [1], [0, 0, 1, 1], [], []>} : vector<16x128xbf16>, vector<128x128xbf16>, vector<16x128xf32> -> vector<16x128xf32>
    %10 = arith.addf %7, %9 : vector<16x128xf32>
    %c0_11 = arith.constant 0 : index
    %c0_12 = arith.constant 0 : index
    %11 = vector.load %arg7[%c0_11, %c0_12] : memref<128x128xbf16, #tpu.memory_space<vmem>>, vector<128x128xbf16>
    %cst_13 = arith.constant dense<0.000000e+00> : vector<16x128xf32>
    %12 = tpu.matmul %3, %11, %cst_13 {dimension_numbers = #tpu.dot_dimension_numbers<[1], [0], [0], [1], [0, 0, 1, 1], [], []>} : vector<16x128xbf16>, vector<128x128xbf16>, vector<16x128xf32> -> vector<16x128xf32>
    %13 = arith.addf %10, %12 : vector<16x128xf32>
    %c0_14 = arith.constant 0 : index
    %c0_15 = arith.constant 0 : index
    %14 = vector.load %arg8[%c0_14, %c0_15] : memref<128x128xbf16, #tpu.memory_space<vmem>>, vector<128x128xbf16>
    %cst_16 = arith.constant dense<0.000000e+00> : vector<16x128xf32>
    %15 = tpu.matmul %3, %14, %cst_16 {dimension_numbers = #tpu.dot_dimension_numbers<[1], [0], [0], [1], [0, 0, 1, 1], [], []>} : vector<16x128xbf16>, vector<128x128xbf16>, vector<16x128xf32> -> vector<16x128xf32>
    %16 = arith.addf %13, %15 : vector<16x128xf32>
    %17 = arith.addf %5, %16 : vector<16x128xf32>
    %c0_17 = arith.constant 0 : index
    %c0_18 = arith.constant 0 : index
    %18 = vector.load %arg10[%c0_17, %c0_18] : memref<16x128xf32, #tpu.memory_space<vmem>>, vector<16x128xf32>
    tpu.vector_store %arg10[%c0_17, %c0_18], %17 {strides = array<i32>} : memref<16x128xf32, #tpu.memory_space<vmem>>, vector<16x128xf32>,
    return
  }
  func.func @transform_0(%arg0: i32, %arg1: i32, %arg2: i32) -> (i32, i32) {
    %c0_i32 = arith.constant 0 : i32
    return %arg0, %arg2 : i32, i32
  }
  func.func @transform_1(%arg0: i32, %arg1: i32, %arg2: i32) -> (i32, i32) {
    %c0_i32 = arith.constant 0 : i32
    return %arg0, %arg2 : i32, i32
  }
  func.func @transform_2(%arg0: i32, %arg1: i32, %arg2: i32) -> (i32, i32) {
    %c0_i32 = arith.constant 0 : i32
    return %arg0, %arg2 : i32, i32
  }
  func.func @transform_3(%arg0: i32, %arg1: i32, %arg2: i32) -> (i32, i32) {
    %c0_i32 = arith.constant 0 : i32
    return %arg2, %arg1 : i32, i32
  }
  func.func @transform_4(%arg0: i32, %arg1: i32, %arg2: i32) -> (i32, i32) {
    %c0_i32 = arith.constant 0 : i32
    return %arg2, %arg1 : i32, i32
  }
  func.func @transform_5(%arg0: i32, %arg1: i32, %arg2: i32) -> (i32, i32) {
    %c0_i32 = arith.constant 0 : i32
    return %arg2, %arg1 : i32, i32
  }
  func.func @transform_6(%arg0: i32, %arg1: i32, %arg2: i32) -> (i32, i32) {
    %c0_i32 = arith.constant 0 : i32
    %c0_i32_0 = arith.constant 0 : i32
    return %c0_i32, %arg1 : i32, i32
  }
  func.func @transform_7(%arg0: i32, %arg1: i32, %arg2: i32) -> (i32, i32) {
    %c0_i32 = arith.constant 0 : i32
    return %arg0, %arg1 : i32, i32
  }
}

</mosaic_0001>

<llo_original>
// kernel: tpu_custom_call.1
$region0: #{tpu_custom_call.1}
  #allocation0 [shape = 'u32[]', space=smem, size = 0x4, offset = 0x4, fixed_abs, tag = 'smem constant byte address 0x4 - core index']
  #allocation1 [shape = 'u32[144,128]{1,0:T(1,128)}', space=vmem, size = 0x12000, scoped, tag = 'internal scratch']
  %s0 = inlined_call_operand.hbm [shape: bf16[16,128], index: 0, kind: input, shape index: {}]
  %s1 = inlined_call_operand.hbm [shape: bf16[16,128], index: 1, kind: input, shape index: {}]
  %s2 = inlined_call_operand.hbm [shape: bf16[16,128], index: 2, kind: input, shape index: {}]
  %s3 = inlined_call_operand.hbm [shape: bf16[128,128], index: 3, kind: input, shape index: {}]
  %s4 = inlined_call_operand.hbm [shape: bf16[128,128], index: 4, kind: input, shape index: {}]
  %s5 = inlined_call_operand.hbm [shape: bf16[128,128], index: 5, kind: input, shape index: {}]
  %s6 = inlined_call_operand.vmem [shape: f32[1,128], index: 6, kind: input, shape index: {}]
  %s7 = inlined_call_operand.hbm [shape: f32[16,128], index: 7, kind: output, shape index: {}]
  %s8 = sld [smem:[#allocation0]]
  $region66: #{tpu_custom_call.1} parent=0
    _
  %s10 = ssub.s32 1, %s8
  %s11 = scalar_select 0, %s10, %s8
  $region1: #{tpu_custom_call.1} parent=0
    #allocation2 [shape = 'u8[4096]{0}', space=vmem, size = 0x1000, scoped, tag = 'input window, operand 0, single buffered']
    #allocation3 [shape = 's32[1]{0}', space=sflag, size = 0x4, scoped, tag = 'scoped memory for tpu_custom_call.1']
    #allocation4 [shape = 's32[1]{0}', space=sflag, size = 0x4, scoped, tag = 'scoped memory for tpu_custom_call.1']
    #allocation5 [shape = 'u8[4096]{0}', space=vmem, size = 0x1000, scoped, tag = 'input window, operand 1, single buffered']
    #allocation6 [shape = 's32[1]{0}', space=sflag, size = 0x4, scoped, tag = 'scoped memory for tpu_custom_call.1']
    #allocation7 [shape = 'u8[4096]{0}', space=vmem, size = 0x1000, scoped, tag = 'input window, operand 2, single buffered']
    #allocation8 [shape = 'u8[32768]{0}', space=vmem, size = 0x8000, scoped, tag = 'input window, operand 3, single buffered']
    #allocation9 [shape = 's32[1]{0}', space=sflag, size = 0x4, scoped, tag = 'scoped memory for tpu_custom_call.1']
    #allocation10 [shape = 'u8[32768]{0}', space=vmem, size = 0x8000, scoped, tag = 'input window, operand 4, single buffered']
    #allocation11 [shape = 'u8[32768]{0}', space=vmem, size = 0x8000, scoped, tag = 'input window, operand 5, single buffered']
    #allocation12 [shape = 's32[1]{0}', space=sflag, size = 0x4, scoped, tag = 'scoped memory for tpu_custom_call.1']
    #allocation13 [shape = 'u8[8192]{0}', space=vmem, size = 0x2000, scoped, tag = 'output window, operand 0, single buffered']
    %12 = vsyncpa [#allocation3], 0
    %13 = vsyncpa [#allocation6], 0
    %14 = vsyncpa [#allocation9], 0
    %15 = vsyncpa [#allocation12], 0
    %16 = vsyncpa [#allocation4], 0
    // Predicated region
    $region2: #{tpu_custom_call.1} parent=1 // pred_check
      _
    $region3: #{tpu_custom_call.1} parent=1 // pred_check_branch
      %18 = sbr.rel (0) target = $region5
    $region4: #{tpu_custom_call.1} parent=1 // pred_region
      %s20 = ssub.s32 128, 128
      %21 = vsyncadd [#allocation3], %s20
      %s22 = sshll.u32 [#allocation2], 4
      %s23 = int_to_ptr.vmem [resolvable:$true] %s22
      %28 = dma.hbm_to_vmem [thread:$0]  %s0, 128, %s23, [#allocation3], 64, 64, 4
    $region5: #{tpu_custom_call.1} parent=1 // pred_fallthru
      _
    // Predicated region
    $region6: #{tpu_custom_call.1} parent=1 // pred_check
      _
    $region7: #{tpu_custom_call.1} parent=1 // pred_check_branch
      %30 = sbr.rel (0) target = $region9
    $region8: #{tpu_custom_call.1} parent=1 // pred_region
      %s32 = ssub.s32 128, 128
      %33 = vsyncadd [#allocation6], %s32
      %s34 = sshll.u32 [#allocation5], 4
      %s35 = int_to_ptr.vmem [resolvable:$true] %s34
      %40 = dma.hbm_to_vmem [thread:$0]  %s1, 128, %s35, [#allocation6], 64, 64, 4
    $region9: #{tpu_custom_call.1} parent=1 // pred_fallthru
      _
    // Predicated region
    $region10: #{tpu_custom_call.1} parent=1 // pred_check
      _
    $region11: #{tpu_custom_call.1} parent=1 // pred_check_branch
      %42 = sbr.rel (0) target = $region13
    $region12: #{tpu_custom_call.1} parent=1 // pred_region
      %s44 = ssub.s32 128, 128
      %45 = vsyncadd [#allocation6], %s44
      %s46 = sshll.u32 [#allocation7], 4
      %s47 = int_to_ptr.vmem [resolvable:$true] %s46
      %52 = dma.hbm_to_vmem [thread:$0]  %s2, 128, %s47, [#allocation6], 64, 64, 4
    $region13: #{tpu_custom_call.1} parent=1 // pred_fallthru
      _
    // Predicated region
    $region14: #{tpu_custom_call.1} parent=1 // pred_check
      _
    $region15: #{tpu_custom_call.1} parent=1 // pred_check_branch
      %54 = sbr.rel (0) target = $region17
    $region16: #{tpu_custom_call.1} parent=1 // pred_region
      %s56 = ssub.s32 1024, 1024
      %57 = vsyncadd [#allocation9], %s56
      %s58 = sshll.u32 [#allocation8], 4
      %s59 = int_to_ptr.vmem [resolvable:$true] %s58
      %64 = dma.hbm_to_vmem [thread:$0]  %s3, 1024, %s59, [#allocation9], 64, 64, 4
    $region17: #{tpu_custom_call.1} parent=1 // pred_fallthru
      _
    // Predicated region
    $region18: #{tpu_custom_call.1} parent=1 // pred_check
      _
    $region19: #{tpu_custom_call.1} parent=1 // pred_check_branch
      %66 = sbr.rel (0) target = $region21
    $region20: #{tpu_custom_call.1} parent=1 // pred_region
      %s68 = ssub.s32 1024, 1024
      %69 = vsyncadd [#allocation9], %s68
      %s70 = sshll.u32 [#allocation10], 4
      %s71 = int_to_ptr.vmem [resolvable:$true] %s70
      %76 = dma.hbm_to_vmem [thread:$0]  %s4, 1024, %s71, [#allocation9], 64, 64, 4
    $region21: #{tpu_custom_call.1} parent=1 // pred_fallthru
      _
    // Predicated region
    $region22: #{tpu_custom_call.1} parent=1 // pred_check
      _
    $region23: #{tpu_custom_call.1} parent=1 // pred_check_branch
      %78 = sbr.rel (0) target = $region25
    $region24: #{tpu_custom_call.1} parent=1 // pred_region
      %s80 = ssub.s32 1024, 1024
      %81 = vsyncadd [#allocation12], %s80
      %s82 = sshll.u32 [#allocation11], 4
      %s83 = int_to_ptr.vmem [resolvable:$true] %s82
      %88 = dma.hbm_to_vmem [thread:$0]  %s5, 1024, %s83, [#allocation12], 64, 64, 4
    $region25: #{tpu_custom_call.1} parent=1 // pred_fallthru
      _
    // Predicated region
    $region26: #{tpu_custom_call.1} parent=1 // pred_check
      _
    $region27: #{tpu_custom_call.1} parent=1 // pred_check_branch
      %90 = sbr.rel (0) target = $region29
    $region28: #{tpu_custom_call.1} parent=1 // pred_region
      _
    $region29: #{tpu_custom_call.1} parent=1 // pred_fallthru
      _
    // Predicated region
    $region30: #{tpu_custom_call.1} parent=1 // pred_check
      _
    $region31: #{tpu_custom_call.1} parent=1 // pred_check_branch
      %92 = sbr.rel (0) target = $region33
    $region32: #{tpu_custom_call.1} parent=1 // pred_region
      %93 = dma.done [#allocation3], 128
    $region33: #{tpu_custom_call.1} parent=1 // pred_fallthru
      _
    // Predicated region
    $region34: #{tpu_custom_call.1} parent=1 // pred_check
      _
    $region35: #{tpu_custom_call.1} parent=1 // pred_check_branch
      %95 = sbr.rel (0) target = $region37
    $region36: #{tpu_custom_call.1} parent=1 // pred_region
      %96 = dma.done [#allocation6], 128
    $region37: #{tpu_custom_call.1} parent=1 // pred_fallthru
      _
    // Predicated region
    $region38: #{tpu_custom_call.1} parent=1 // pred_check
      _
    $region39: #{tpu_custom_call.1} parent=1 // pred_check_branch
      %98 = sbr.rel (0) target = $region41
    $region40: #{tpu_custom_call.1} parent=1 // pred_region
      %99 = dma.done [#allocation6], 128
    $region41: #{tpu_custom_call.1} parent=1 // pred_fallthru
      _
    // Predicated region
    $region42: #{tpu_custom_call.1} parent=1 // pred_check
      _
    $region43: #{tpu_custom_call.1} parent=1 // pred_check_branch
      %101 = sbr.rel (0) target = $region45
    $region44: #{tpu_custom_call.1} parent=1 // pred_region
      %102 = dma.done [#allocation9], 1024
    $region45: #{tpu_custom_call.1} parent=1 // pred_fallthru
      _
    // Predicated region
    $region46: #{tpu_custom_call.1} parent=1 // pred_check
      _
    $region47: #{tpu_custom_call.1} parent=1 // pred_check_branch
      %104 = sbr.rel (0) target = $region49
    $region48: #{tpu_custom_call.1} parent=1 // pred_region
      %105 = dma.done [#allocation9], 1024
    $region49: #{tpu_custom_call.1} parent=1 // pred_fallthru
      _
    // Predicated region
    $region50: #{tpu_custom_call.1} parent=1 // pred_check
      _
    $region51: #{tpu_custom_call.1} parent=1 // pred_check_branch
      %107 = sbr.rel (0) target = $region53
    $region52: #{tpu_custom_call.1} parent=1 // pred_region
      %108 = dma.done [#allocation12], 1024
    $region53: #{tpu_custom_call.1} parent=1 // pred_fallthru
      _
    %p110 = scmp.eq.s32.totalorder 0, 0
    // Predicated region
    $region54: #{tpu_custom_call.1} parent=1 // pred_check
      %p111 = pneg %p110
    $region55: #{tpu_custom_call.1} parent=1 // pred_check_branch
      %113 = sbr.rel (%p111) target = $region57
    $region56: #{tpu_custom_call.1} parent=1 // pred_region
      %v114 = vld [vmem:[%s6] sm:$0x1]
      %v116 = vlaneseq
      %v117 = vshrl.u32 %v116, 7
      %v118 = vsub.s32 0, %v117
      %v119 = vrot.slane %v114, %v118
      %v121 = vadd.f32 %v119, 0.0
      %122 = vst [vmem:[#allocation13] sm:$0xff] %v121
      %123 = vst [vmem:[#allocation13 + $0x8] sm:$0xff] %v121
    $region57: #{tpu_custom_call.1} parent=1 // pred_fallthru
      _
    %v124 = vld [vmem:[#allocation7] sm:$0xf]
    %v125 = vld [vmem:[#allocation7 + $0x4] sm:$0xf]
    %v126 = vld [vmem:[#allocation8] sm:$0xf]
    %v127 = vld [vmem:[#allocation8 + $0x4] sm:$0xf]
    %v128 = vld [vmem:[#allocation8 + $0x8] sm:$0xf]
    %v129 = vld [vmem:[#allocation8 + $0xc] sm:$0xf]
    %v130 = vld [vmem:[#allocation8 + $0x10] sm:$0xf]
    %v131 = vld [vmem:[#allocation8 + $0x14] sm:$0xf]
    %v132 = vld [vmem:[#allocation8 + $0x18] sm:$0xf]
    %v133 = vld [vmem:[#allocation8 + $0x1c] sm:$0xf]
    %v134 = vld [vmem:[#allocation8 + $0x20] sm:$0xf]
    %v135 = vld [vmem:[#allocation8 + $0x24] sm:$0xf]
    %v136 = vld [vmem:[#allocation8 + $0x28] sm:$0xf]
    %v137 = vld [vmem:[#allocation8 + $0x2c] sm:$0xf]
    %v138 = vld [vmem:[#allocation8 + $0x30] sm:$0xf]
    %v139 = vld [vmem:[#allocation8 + $0x34] sm:$0xf]
    %v140 = vld [vmem:[#allocation8 + $0x38] sm:$0xf]
    %v141 = vld [vmem:[#allocation8 + $0x3c] sm:$0xf]
    %v142 = vld [vmem:[#allocation13] sm:$0xff]
    %v143 = vld [vmem:[#allocation13 + $0x8] sm:$0xff]
    %v144 = vld [vmem:[#allocation2] sm:$0xf]
    %v145 = vld [vmem:[#allocation2 + $0x4] sm:$0xf]
    %v146 = vld [vmem:[#allocation5] sm:$0xf]
    %v147 = vld [vmem:[#allocation5 + $0x4] sm:$0xf]
    %v150 = vunpack.c.l.b16 %v146
    %v151 = vunpack.c.l.b16 %v147
    %v152 = vpack.c.b16 %v151, %v150
    %v170 = vunpack.c.l.b16 %v126
    %v171 = vunpack.c.l.b16 %v127
    %v172 = vunpack.c.l.b16 %v128
    %v173 = vunpack.c.l.b16 %v129
    %v174 = vunpack.c.l.b16 %v130
    %v175 = vunpack.c.l.b16 %v131
    %v176 = vunpack.c.l.b16 %v132
    %v177 = vunpack.c.l.b16 %v133
    %v178 = vunpack.c.l.b16 %v134
    %v179 = vunpack.c.l.b16 %v135
    %v180 = vunpack.c.l.b16 %v136
    %v181 = vunpack.c.l.b16 %v137
    %v182 = vunpack.c.l.b16 %v138
    %v183 = vunpack.c.l.b16 %v139
    %v184 = vunpack.c.l.b16 %v140
    %v185 = vunpack.c.l.b16 %v141
    %v186 = vpack.c.b16 %v171, %v170
    %v187 = vpack.c.b16 %v173, %v172
    %v188 = vpack.c.b16 %v175, %v174
    %v189 = vpack.c.b16 %v177, %v176
    %v190 = vpack.c.b16 %v179, %v178
    %v191 = vpack.c.b16 %v181, %v180
    %v192 = vpack.c.b16 %v183, %v182
    %v193 = vpack.c.b16 %v185, %v184
    %202 = vmatprep.subr.bf16.mxu0 0
    %203 = vmatpush1.bf16.msra.mxu0 %v186
    %204 = vmatprep.subr.bf16.mxu0 0
    %205 = vmatpush1.bf16.msra.mxu0 %v187
    %206 = vmatprep.subr.bf16.mxu0 0
    %207 = vmatpush1.bf16.msra.mxu0 %v188
    %208 = vmatprep.subr.bf16.mxu0 0
    %209 = vmatpush1.bf16.msra.mxu0 %v189
    %210 = vmatprep.subr.bf16.mxu0 0
    %211 = vmatpush1.bf16.msra.mxu0 %v190
    %212 = vmatprep.subr.bf16.mxu0 0
    %213 = vmatpush1.bf16.msra.mxu0 %v191
    %214 = vmatprep.subr.bf16.mxu0 0
    %215 = vmatpush1.bf16.msra.mxu0 %v192
    %216 = vmatprep.subr.bf16.mxu0 0
    %217 = vmatpush1.bf16.msra.mxu0 %v193
    %218 = vmatprep.subr.bf16.mxu0 0
    %219 = vmatpush1.bf16.msra.mxu0 0
    %220 = vmatprep.subr.bf16.mxu0 0
    %221 = vmatpush1.bf16.msra.mxu0 0
    %222 = vmatprep.subr.bf16.mxu0 0
    %223 = vmatpush1.bf16.msra.mxu0 0
    %224 = vmatprep.subr.bf16.mxu0 0
    %225 = vmatpush1.bf16.msra.mxu0 0
    %226 = vmatprep.subr.bf16.mxu0 0
    %227 = vmatpush1.bf16.msra.mxu0 0
    %228 = vmatprep.subr.bf16.mxu0 0
    %229 = vmatpush1.bf16.msra.mxu0 0
    %230 = vmatprep.subr.bf16.mxu0 0
    %231 = vmatpush1.bf16.msra.mxu0 0
    %232 = vmatprep.subr.bf16.mxu0 0
    %233 = vmatpush1.bf16.msra.mxu0 0
    %234 = vmatprep.mubr.bf16.mxu0 0
    %235 = vmatmul.mubr.bf16.gmra.mrb[0].mxu0 %v152
    %v236 = vpop.f32.mrb[0].mxu0
    %v237 = vadd.f32 0.0, %v236
    %v238 = vpop.f32.mrb[0].mxu0
    %v239 = vpop.f32.mrb[0].mxu0
    %v240 = vadd.f32 0.0, %v239
    %v241 = vpop.f32.mrb[0].mxu0
    %242 = vdwg.mxu0
    %v245 = vunpack.c.l.b16 %v144
    %v246 = vunpack.c.l.b16 %v145
    %v247 = vpack.c.b16 %v246, %v245
    %249 = vmatprep.subr.bf16.mxu0 0
    %250 = vmatpush1.bf16.msra.mxu0 %v186
    %251 = vmatprep.subr.bf16.mxu0 0
    %252 = vmatpush1.bf16.msra.mxu0 %v187
    %253 = vmatprep.subr.bf16.mxu0 0
    %254 = vmatpush1.bf16.msra.mxu0 %v188
    %255 = vmatprep.subr.bf16.mxu0 0
    %256 = vmatpush1.bf16.msra.mxu0 %v189
    %257 = vmatprep.subr.bf16.mxu0 0
    %258 = vmatpush1.bf16.msra.mxu0 %v190
    %259 = vmatprep.subr.bf16.mxu0 0
    %260 = vmatpush1.bf16.msra.mxu0 %v191
    %261 = vmatprep.subr.bf16.mxu0 0
    %262 = vmatpush1.bf16.msra.mxu0 %v192
    %263 = vmatprep.subr.bf16.mxu0 0
    %264 = vmatpush1.bf16.msra.mxu0 %v193
    %265 = vmatprep.subr.bf16.mxu0 0
    %266 = vmatpush1.bf16.msra.mxu0 0
    %267 = vmatprep.subr.bf16.mxu0 0
    %268 = vmatpush1.bf16.msra.mxu0 0
    %269 = vmatprep.subr.bf16.mxu0 0
    %270 = vmatpush1.bf16.msra.mxu0 0
    %271 = vmatprep.subr.bf16.mxu0 0
    %272 = vmatpush1.bf16.msra.mxu0 0
    %273 = vmatprep.subr.bf16.mxu0 0
    %274 = vmatpush1.bf16.msra.mxu0 0
    %275 = vmatprep.subr.bf16.mxu0 0
    %276 = vmatpush1.bf16.msra.mxu0 0
    %277 = vmatprep.subr.bf16.mxu0 0
    %278 = vmatpush1.bf16.msra.mxu0 0
    %279 = vmatprep.subr.bf16.mxu0 0
    %280 = vmatpush1.bf16.msra.mxu0 0
    %281 = vmatprep.mubr.bf16.mxu0 0
    %282 = vmatmul.mubr.bf16.gmra.mrb[0].mxu0 %v247
    %v283 = vpop.f32.mrb[0].mxu0
    %v284 = vadd.f32 %v237, %v283
    %v285 = vpop.f32.mrb[0].mxu0
    %v286 = vpop.f32.mrb[0].mxu0
    %v287 = vadd.f32 %v240, %v286
    %v288 = vpop.f32.mrb[0].mxu0
    %289 = vdwg.mxu0
    %v290 = vld [vmem:[#allocation10] sm:$0xf]
    %v291 = vld [vmem:[#allocation10 + $0x4] sm:$0xf]
    %v292 = vld [vmem:[#allocation10 + $0x8] sm:$0xf]
    %v293 = vld [vmem:[#allocation10 + $0xc] sm:$0xf]
    %v294 = vld [vmem:[#allocation10 + $0x10] sm:$0xf]
    %v295 = vld [vmem:[#allocation10 + $0x14] sm:$0xf]
    %v296 = vld [vmem:[#allocation10 + $0x18] sm:$0xf]
    %v297 = vld [vmem:[#allocation10 + $0x1c] sm:$0xf]
    %v298 = vld [vmem:[#allocation10 + $0x20] sm:$0xf]
    %v299 = vld [vmem:[#allocation10 + $0x24] sm:$0xf]
    %v300 = vld [vmem:[#allocation10 + $0x28] sm:$0xf]
    %v301 = vld [vmem:[#allocation10 + $0x2c] sm:$0xf]
    %v302 = vld [vmem:[#allocation10 + $0x30] sm:$0xf]
    %v303 = vld [vmem:[#allocation10 + $0x34] sm:$0xf]
    %v304 = vld [vmem:[#allocation10 + $0x38] sm:$0xf]
    %v305 = vld [vmem:[#allocation10 + $0x3c] sm:$0xf]
    %v308 = vunpack.c.l.b16 %v124
    %v309 = vunpack.c.l.b16 %v125
    %v310 = vpack.c.b16 %v309, %v308
    %v328 = vunpack.c.l.b16 %v290
    %v329 = vunpack.c.l.b16 %v291
    %v330 = vunpack.c.l.b16 %v292
    %v331 = vunpack.c.l.b16 %v293
    %v332 = vunpack.c.l.b16 %v294
    %v333 = vunpack.c.l.b16 %v295
    %v334 = vunpack.c.l.b16 %v296
    %v335 = vunpack.c.l.b16 %v297
    %v336 = vunpack.c.l.b16 %v298
    %v337 = vunpack.c.l.b16 %v299
    %v338 = vunpack.c.l.b16 %v300
    %v339 = vunpack.c.l.b16 %v301
    %v340 = vunpack.c.l.b16 %v302
    %v341 = vunpack.c.l.b16 %v303
    %v342 = vunpack.c.l.b16 %v304
    %v343 = vunpack.c.l.b16 %v305
    %v344 = vpack.c.b16 %v329, %v328
    %v345 = vpack.c.b16 %v331, %v330
    %v346 = vpack.c.b16 %v333, %v332
    %v347 = vpack.c.b16 %v335, %v334
    %v348 = vpack.c.b16 %v337, %v336
    %v349 = vpack.c.b16 %v339, %v338
    %v350 = vpack.c.b16 %v341, %v340
    %v351 = vpack.c.b16 %v343, %v342
    %360 = vmatprep.subr.bf16.mxu0 0
    %361 = vmatpush1.bf16.msra.mxu0 %v344
    %362 = vmatprep.subr.bf16.mxu0 0
    %363 = vmatpush1.bf16.msra.mxu0 %v345
    %364 = vmatprep.subr.bf16.mxu0 0
    %365 = vmatpush1.bf16.msra.mxu0 %v346
    %366 = vmatprep.subr.bf16.mxu0 0
    %367 = vmatpush1.bf16.msra.mxu0 %v347
    %368 = vmatprep.subr.bf16.mxu0 0
    %369 = vmatpush1.bf16.msra.mxu0 %v348
    %370 = vmatprep.subr.bf16.mxu0 0
    %371 = vmatpush1.bf16.msra.mxu0 %v349
    %372 = vmatprep.subr.bf16.mxu0 0
    %373 = vmatpush1.bf16.msra.mxu0 %v350
    %374 = vmatprep.subr.bf16.mxu0 0
    %375 = vmatpush1.bf16.msra.mxu0 %v351
    %376 = vmatprep.subr.bf16.mxu0 0
    %377 = vmatpush1.bf16.msra.mxu0 0
    %378 = vmatprep.subr.bf16.mxu0 0
    %379 = vmatpush1.bf16.msra.mxu0 0
    %380 = vmatprep.subr.bf16.mxu0 0
    %381 = vmatpush1.bf16.msra.mxu0 0
    %382 = vmatprep.subr.bf16.mxu0 0
    %383 = vmatpush1.bf16.msra.mxu0 0
    %384 = vmatprep.subr.bf16.mxu0 0
    %385 = vmatpush1.bf16.msra.mxu0 0
    %386 = vmatprep.subr.bf16.mxu0 0
    %387 = vmatpush1.bf16.msra.mxu0 0
    %388 = vmatprep.subr.bf16.mxu0 0
    %389 = vmatpush1.bf16.msra.mxu0 0
    %390 = vmatprep.subr.bf16.mxu0 0
    %391 = vmatpush1.bf16.msra.mxu0 0
    %392 = vmatprep.mubr.bf16.mxu0 0
    %393 = vmatmul.mubr.bf16.gmra.mrb[0].mxu0 %v310
    %v394 = vpop.f32.mrb[0].mxu0
    %v395 = vadd.f32 0.0, %v394
    %v396 = vpop.f32.mrb[0].mxu0
    %v397 = vpop.f32.mrb[0].mxu0
    %v398 = vadd.f32 0.0, %v397
    %v399 = vpop.f32.mrb[0].mxu0
    %400 = vdwg.mxu0
    %v401 = vadd.f32 %v284, %v395
    %v402 = vadd.f32 %v287, %v398
    %v403 = vld [vmem:[#allocation11] sm:$0xf]
    %v404 = vld [vmem:[#allocation11 + $0x4] sm:$0xf]
    %v405 = vld [vmem:[#allocation11 + $0x8] sm:$0xf]
    %v406 = vld [vmem:[#allocation11 + $0xc] sm:$0xf]
    %v407 = vld [vmem:[#allocation11 + $0x10] sm:$0xf]
    %v408 = vld [vmem:[#allocation11 + $0x14] sm:$0xf]
    %v409 = vld [vmem:[#allocation11 + $0x18] sm:$0xf]
    %v410 = vld [vmem:[#allocation11 + $0x1c] sm:$0xf]
    %v411 = vld [vmem:[#allocation11 + $0x20] sm:$0xf]
    %v412 = vld [vmem:[#allocation11 + $0x24] sm:$0xf]
    %v413 = vld [vmem:[#allocation11 + $0x28] sm:$0xf]
    %v414 = vld [vmem:[#allocation11 + $0x2c] sm:$0xf]
    %v415 = vld [vmem:[#allocation11 + $0x30] sm:$0xf]
    %v416 = vld [vmem:[#allocation11 + $0x34] sm:$0xf]
    %v417 = vld [vmem:[#allocation11 + $0x38] sm:$0xf]
    %v418 = vld [vmem:[#allocation11 + $0x3c] sm:$0xf]
    %v435 = vunpack.c.l.b16 %v403
    %v436 = vunpack.c.l.b16 %v404
    %v437 = vunpack.c.l.b16 %v405
    %v438 = vunpack.c.l.b16 %v406
    %v439 = vunpack.c.l.b16 %v407
    %v440 = vunpack.c.l.b16 %v408
    %v441 = vunpack.c.l.b16 %v409
    %v442 = vunpack.c.l.b16 %v410
    %v443 = vunpack.c.l.b16 %v411
    %v444 = vunpack.c.l.b16 %v412
    %v445 = vunpack.c.l.b16 %v413
    %v446 = vunpack.c.l.b16 %v414
    %v447 = vunpack.c.l.b16 %v415
    %v448 = vunpack.c.l.b16 %v416
    %v449 = vunpack.c.l.b16 %v417
    %v450 = vunpack.c.l.b16 %v418
    %v451 = vpack.c.b16 %v436, %v435
    %v452 = vpack.c.b16 %v438, %v437
    %v453 = vpack.c.b16 %v440, %v439
    %v454 = vpack.c.b16 %v442, %v441
    %v455 = vpack.c.b16 %v444, %v443
    %v456 = vpack.c.b16 %v446, %v445
    %v457 = vpack.c.b16 %v448, %v447
    %v458 = vpack.c.b16 %v450, %v449
    %467 = vmatprep.subr.bf16.mxu0 0
    %468 = vmatpush1.bf16.msra.mxu0 %v451
    %469 = vmatprep.subr.bf16.mxu0 0
    %470 = vmatpush1.bf16.msra.mxu0 %v452
    %471 = vmatprep.subr.bf16.mxu0 0
    %472 = vmatpush1.bf16.msra.mxu0 %v453
    %473 = vmatprep.subr.bf16.mxu0 0
    %474 = vmatpush1.bf16.msra.mxu0 %v454
    %475 = vmatprep.subr.bf16.mxu0 0
    %476 = vmatpush1.bf16.msra.mxu0 %v455
    %477 = vmatprep.subr.bf16.mxu0 0
    %478 = vmatpush1.bf16.msra.mxu0 %v456
    %479 = vmatprep.subr.bf16.mxu0 0
    %480 = vmatpush1.bf16.msra.mxu0 %v457
    %481 = vmatprep.subr.bf16.mxu0 0
    %482 = vmatpush1.bf16.msra.mxu0 %v458
    %483 = vmatprep.subr.bf16.mxu0 0
    %484 = vmatpush1.bf16.msra.mxu0 0
    %485 = vmatprep.subr.bf16.mxu0 0
    %486 = vmatpush1.bf16.msra.mxu0 0
    %487 = vmatprep.subr.bf16.mxu0 0
    %488 = vmatpush1.bf16.msra.mxu0 0
    %489 = vmatprep.subr.bf16.mxu0 0
    %490 = vmatpush1.bf16.msra.mxu0 0
    %491 = vmatprep.subr.bf16.mxu0 0
    %492 = vmatpush1.bf16.msra.mxu0 0
    %493 = vmatprep.subr.bf16.mxu0 0
    %494 = vmatpush1.bf16.msra.mxu0 0
    %495 = vmatprep.subr.bf16.mxu0 0
    %496 = vmatpush1.bf16.msra.mxu0 0
    %497 = vmatprep.subr.bf16.mxu0 0
    %498 = vmatpush1.bf16.msra.mxu0 0
    %499 = vmatprep.mubr.bf16.mxu0 0
    %500 = vmatmul.mubr.bf16.gmra.mrb[0].mxu0 %v310
    %v501 = vpop.f32.mrb[0].mxu0
    %v502 = vadd.f32 0.0, %v501
    %v503 = vpop.f32.mrb[0].mxu0
    %v504 = vpop.f32.mrb[0].mxu0
    %v505 = vadd.f32 0.0, %v504
    %v506 = vpop.f32.mrb[0].mxu0
    %507 = vdwg.mxu0
    %v508 = vadd.f32 %v401, %v502
    %v509 = vadd.f32 %v402, %v505
    %v510 = vadd.f32 %v142, %v508
    %v511 = vadd.f32 %v143, %v509
    %512 = vst [vmem:[#allocation13] sm:$0xff] %v510
    %513 = vst [vmem:[#allocation13 + $0x8] sm:$0xff] %v511
    // Predicated region
    $region58: #{tpu_custom_call.1} parent=1 // pred_check
      _
    $region59: #{tpu_custom_call.1} parent=1 // pred_check_branch
      %515 = sbr.rel (0) target = $region61
    $region60: #{tpu_custom_call.1} parent=1 // pred_region
      %s517 = ssub.s32 256, 256
      %518 = vsyncadd [#allocation4], %s517
      %s519 = sshll.u32 [#allocation13], 4
      %s520 = int_to_ptr.vmem [resolvable:$true] %s519
      %525 = dma.vmem_to_hbm [thread:$0]  %s520, 256, %s7, [#allocation4], 128, 128, 8
    $region61: #{tpu_custom_call.1} parent=1 // pred_fallthru
      _
    // Predicated region
    $region62: #{tpu_custom_call.1} parent=1 // pred_check
      _
    $region63: #{tpu_custom_call.1} parent=1 // pred_check_branch
      %527 = sbr.rel (0) target = $region65
    $region64: #{tpu_custom_call.1} parent=1 // pred_region
      %528 = dma.done [#allocation4], 256
    $region65: #{tpu_custom_call.1} parent=1 // pred_fallthru
      _
    %529 = vsyncpa [#allocation3], 1
    %530 = vsyncpa [#allocation6], 1
    %531 = vsyncpa [#allocation9], 1
    %532 = vsyncpa [#allocation12], 1
    %533 = vsyncpa [#allocation4], 1

</llo_original>
